<compile_context>
chip_gen: v7x
topology: tpu7x:2x2x1
jax: 0.10.0
libtpu: 0.0.40
codegen_flags: <defaults>
</compile_context>

<pallas_src>
import functools

import jax
import jax.numpy as jnp
from jax.experimental import pallas as pl
from jax.experimental.pallas import tpu as pltpu


def _round_up(x, m):
    return (x + m - 1) // m * m


def _vmem_capacity_bytes():
    try:
        return int(pltpu.get_tpu_info().vmem_capacity_bytes)
    except Exception:
        return 64 * 1024 * 1024  # conservative per-core fallback (v7x)


def _spatial_prob_atten_kernel(xi_ref, xr_ref, w1_ref, wa_img_ref, wa_rad_ref,
                               ba_ref, wb_ref, bb_ref, o_ref, *, divide):
    # xi_ref/xr_ref/o_ref: (1, C, T) NCHW tiles (C = sublanes, flattened HW = lanes)
    # w1_ref:   (1, C, 1)  per-batch global-branch logits (precomputed, f32)
    # wa_*:     (Hd, C)    split first spatial conv, pre-transposed, bf16
    # ba:       (Hd, 1)    f32 bias
    # wb:       (C, Hd)    second spatial conv, pre-transposed, bf16
    # bb:       (C, 1)     f32 bias
    xi = xi_ref[0]                                                   # (C, T)
    xr = xr_ref[0]                                                   # (C, T)

    # bf16 MXU operands, f32 accumulation.
    xi_m = xi.astype(jnp.bfloat16)
    xr_m = xr.astype(jnp.bfloat16)

    h = (jnp.dot(wa_img_ref[...], xi_m, preferred_element_type=jnp.float32)
         + jnp.dot(wa_rad_ref[...], xr_m, preferred_element_type=jnp.float32)
         + ba_ref[...])                                              # (Hd, T) f32
    w2 = (jnp.dot(wb_ref[...], h.astype(jnp.bfloat16),
                  preferred_element_type=jnp.float32)
          + bb_ref[...])                                             # (C, T) f32

    logits = w1_ref[0] + w2                                          # (C,1) + (C,T)
    xi32 = xi.astype(jnp.float32)
    xr32 = xr.astype(jnp.float32)
    if divide:
        # Matches PyTorch semantics; keep exact math since (1-gate) -> 0 as gate -> 1.
        gate = 1.0 / (1.0 + jnp.exp(-logits))
        out = (xi32 + xr32) / (1.0 - gate)
    else:
        gate = pl.reciprocal(1.0 + jnp.exp(-logits), approx=True)    # EUP slot
        out = xr32 + gate * (xi32 - xr32)                            # == gate*xi + (1-gate)*xr
    o_ref[0] = out.astype(o_ref.dtype)


def spatial_prob_atten(img_bev, radar_bev, params, *, divide=False, tile_cols=None):
    """img_bev: (B, C, H, W), radar_bev: (B, C, H, W) -> (B, C, H, W). Native NCHW in/out."""
    B, c_img, H, W = img_bev.shape
    b2, c_rad, h2, w2_ = radar_bev.shape
    assert (b2, h2, w2_) == (B, H, W)
    assert c_img == c_rad, "w1 + w2 in SpatialProbAtten broadcasts only if channel counts match"
    C = c_img
    hidden = params["w2a"].shape[1]
    HW = H * W
    dtype = img_bev.dtype
    itemsize = jnp.dtype(dtype).itemsize

    # Flattened NCHW views (free reshapes, no data movement, no padding).
    xi = img_bev.reshape(B, C, HW)
    xr = radar_bev.reshape(B, C, HW)

    # ---------------- global-pool branch (tiny, plain JAX) ----------------
    # AdaptiveAvgPool2d(1) -> Conv1x1 -> Conv1x1 on the pooled (B, Cc) vector.  This needs the
    # full-image mean before any output tile can be gated, so it is one extra reduction pass.
    pooled = jnp.concatenate(
        [jnp.mean(xi, axis=2), jnp.mean(xr, axis=2)], axis=1).astype(jnp.float32)   # (B, Cc)
    g1 = pooled @ params["w1a"].astype(jnp.float32) + params["b1a"].astype(jnp.float32)
    w1_logits = (g1 @ params["w1b"].astype(jnp.float32)
                 + params["b1b"].astype(jnp.float32))[:, :, None]                   # (B, C, 1)

    # ----- spatial-branch weights: split over the virtual concat, pre-transposed, bf16 -----
    wa_img = params["w2a"][:C].T.astype(jnp.bfloat16)        # (Hd, C)  img rows of concat conv
    wa_rad = params["w2a"][C:].T.astype(jnp.bfloat16)        # (Hd, C)  radar rows
    ba = params["b2a"].astype(jnp.float32)[:, None]          # (Hd, 1)
    wb = params["w2b"].T.astype(jnp.bfloat16)                # (C, Hd)
    bb = params["b2b"].astype(jnp.float32)[:, None]          # (C, 1)

    # ---------------- generation-aware lane-tile size ----------------
    vmem_cap = _vmem_capacity_bytes()
    if tile_cols is None:
        # Per lane-column bytes: 3 double-buffered (1,C,T) I/O blocks + in-kernel temporaries
        # (h f32+bf16, logits/gate f32, xi32, xr32, out_f32, xi/xr bf16 copies).
        per_col = 3 * C * itemsize * 2 + (6 * hidden + 24 * C)
        resident = 2 * 2 * 3 * hidden * C                    # bf16 weights, double-buffered
        budget = int(0.45 * vmem_cap) - resident - (1 << 20)  # 1 MiB slack (biases, w1, misc)
        tile_cols = max(128, min(8192, max(128, budget // per_col) // 128 * 128))
    T = min(tile_cols, _round_up(HW, 128))
    # Keep >= 4 parallel grid steps so v7x's 2 TensorCores both get work on small inputs.
    while B * pl.cdiv(HW, T) < 4 and T > 128:
        T = max(128, (T // 2) // 128 * 128)
    nt = pl.cdiv(HW, T)

    kernel = functools.partial(_spatial_prob_atten_kernel, divide=divide)
    out = pl.pallas_call(
        kernel,
        out_shape=jax.ShapeDtypeStruct((B, C, HW), dtype),
        grid_spec=pltpu.PrefetchScalarGridSpec(
            num_scalar_prefetch=0,
            grid=(B, nt),
            in_specs=[
                pl.BlockSpec((1, C, T), lambda b, t: (b, 0, t)),     # img tile (NCHW)
                pl.BlockSpec((1, C, T), lambda b, t: (b, 0, t)),     # radar tile (NCHW)
                pl.BlockSpec((1, C, 1), lambda b, t: (b, 0, 0)),     # global-branch logits
                pl.BlockSpec((hidden, C), lambda b, t: (0, 0)),      # wa_img (resident)
                pl.BlockSpec((hidden, C), lambda b, t: (0, 0)),      # wa_rad (resident)
                pl.BlockSpec((hidden, 1), lambda b, t: (0, 0)),      # ba
                pl.BlockSpec((C, hidden), lambda b, t: (0, 0)),      # wb (resident)
                pl.BlockSpec((C, 1), lambda b, t: (0, 0)),           # bb
            ],
            out_specs=pl.BlockSpec((1, C, T), lambda b, t: (b, 0, t)),
        ),
        compiler_params=pltpu.CompilerParams(
            dimension_semantics=("parallel", "parallel"),
            vmem_limit_bytes=int(0.8 * vmem_cap),
        ),
    )(xi, xr, w1_logits, wa_img, wa_rad, ba, wb, bb)

    return out.reshape(B, C, H, W)


def init_params(key, img_bev_channels=256, radar_bev_channels=256, r=4, dtype=jnp.float32):
    """Weights stored in matmul layout (C_in, C_out) == PyTorch conv weight[:, :, 0, 0].T."""
    cc = img_bev_channels + radar_bev_channels
    hidden = cc // r
    ks = jax.random.split(key, 8)
    s = 0.05
    return {
        # weight_b1: AdaptiveAvgPool2d(1) -> Conv1x1(cc->hidden) -> Conv1x1(hidden->C_img)
        "w1a": jax.random.normal(ks[0], (cc, hidden), dtype) * s,
        "b1a": jax.random.normal(ks[1], (hidden,), dtype) * 0.1,
        "w1b": jax.random.normal(ks[2], (hidden, img_bev_channels), dtype) * s,
        "b1b": jax.random.normal(ks[3], (img_bev_channels,), dtype) * 0.1,
        # weight_b2: Conv1x1(cc->hidden) -> Conv1x1(hidden->C_rad)
        "w2a": jax.random.normal(ks[4], (cc, hidden), dtype) * s,
        "b2a": jax.random.normal(ks[5], (hidden,), dtype) * 0.1,
        "w2b": jax.random.normal(ks[6], (hidden, radar_bev_channels), dtype) * s,
        "b2b": jax.random.normal(ks[7], (radar_bev_channels,), dtype) * 0.1,
    }


def _reference(img_bev, radar_bev, params, divide=False):
    """Plain-JAX f32 transcription of the PyTorch forward (NCHW)."""
    concat = jnp.concatenate([img_bev, radar_bev], axis=1)           # (B, Cc, H, W)
    pooled = concat.mean(axis=(2, 3))                                # (B, Cc)
    w1 = (pooled @ params["w1a"] + params["b1a"]) @ params["w1b"] + params["b1b"]   # (B, C)
    h = jnp.einsum("bchw,cd->bdhw", concat, params["w2a"]) + params["b2a"][None, :, None, None]
    w2 = jnp.einsum("bdhw,dc->bchw", h, params["w2b"]) + params["b2b"][None, :, None, None]
    weight = jax.nn.sigmoid(w1[:, :, None, None] + w2)
    if divide:
        return (img_bev + radar_bev) / (1.0 - weight)
    return weight * img_bev + (1.0 - weight) * radar_bev


if __name__ == "__main__":
    # Small shapes consistent with the module (channel counts scaled down, r=4 kept).
    B, H, W = 2, 16, 16
    img_ch, rad_ch, r = 32, 32, 4

    key = jax.random.PRNGKey(0)
    k_img, k_rad, k_par = jax.random.split(key, 3)
    img_bev = jax.random.normal(k_img, (B, img_ch, H, W), jnp.float32)
    radar_bev = jax.random.normal(k_rad, (B, rad_ch, H, W), jnp.float32)
    params = init_params(k_par, img_ch, rad_ch, r)

    out = jax.block_until_ready(spatial_prob_atten(img_bev, radar_bev, params))
    ref = jax.block_until_ready(_reference(img_bev, radar_bev, params))

    assert out.shape == (B, img_ch, H, W)
    max_err = float(jnp.max(jnp.abs(out - ref)))
    # bf16 MXU weights/activations + approx reciprocal in the gate -> looser tolerance than a
    # pure-f32 kernel; the blend itself stays f32, so end-to-end error remains small.
    assert max_err < 2e-2, max_err

    print("KERNEL_OK")
</pallas_src>

<mosaic_0001>
module attributes {stable_mosaic.version = 11 : i64} {
  func.func @_spatial_prob_atten_kernel(%arg0: i32, %arg1: i32, %arg2: memref<1x32x128xf32, #tpu.memory_space<vmem>>, %arg3: memref<1x32x128xf32, #tpu.memory_space<vmem>>, %arg4: memref<1x32x1xf32, #tpu.memory_space<vmem>>, %arg5: memref<16x32xbf16, #tpu.memory_space<vmem>>, %arg6: memref<16x32xbf16, #tpu.memory_space<vmem>>, %arg7: memref<16x1xf32, #tpu.memory_space<vmem>>, %arg8: memref<32x16xbf16, #tpu.memory_space<vmem>>, %arg9: memref<32x1xf32, #tpu.memory_space<vmem>>, %arg10: memref<1x32x128xf32, #tpu.memory_space<vmem>>) attributes {dimension_semantics = [#tpu.dimension_semantics<parallel>, #tpu.dimension_semantics<parallel>], iteration_bounds = array<i64: 2, 2>, scalar_prefetch = 0 : i64, scratch_operands = 0 : i64, tpu.core_type = #tpu.core_type<tc>, window_params = [{transform_indices = @transform_0, window_bounds = array<i64: 1, 32, 128>}, {transform_indices = @transform_1, window_bounds = array<i64: 1, 32, 128>}, {transform_indices = @transform_2, window_bounds = array<i64: 1, 32, 1>}, {pipeline_mode = #tpu.pipeline_mode<synchronous>, transform_indices = @transform_3, window_bounds = array<i64: 16, 32>}, {pipeline_mode = #tpu.pipeline_mode<synchronous>, transform_indices = @transform_4, window_bounds = array<i64: 16, 32>}, {pipeline_mode = #tpu.pipeline_mode<synchronous>, transform_indices = @transform_5, window_bounds = array<i64: 16, 1>}, {pipeline_mode = #tpu.pipeline_mode<synchronous>, transform_indices = @transform_6, window_bounds = array<i64: 32, 16>}, {pipeline_mode = #tpu.pipeline_mode<synchronous>, transform_indices = @transform_7, window_bounds = array<i64: 32, 1>}, {transform_indices = @transform_8, window_bounds = array<i64: 1, 32, 128>}]} {
    %c0 = arith.constant 0 : index
    %c0_0 = arith.constant 0 : index
    %c0_1 = arith.constant 0 : index
    %0 = vector.load %arg2[%c0, %c0_0, %c0_1] : memref<1x32x128xf32, #tpu.memory_space<vmem>>, vector<1x32x128xf32>
    %1 = vector.shape_cast %0 : vector<1x32x128xf32> to vector<32x128xf32>
    %c0_2 = arith.constant 0 : index
    %c0_3 = arith.constant 0 : index
    %c0_4 = arith.constant 0 : index
    %2 = vector.load %arg3[%c0_2, %c0_3, %c0_4] : memref<1x32x128xf32, #tpu.memory_space<vmem>>, vector<1x32x128xf32>
    %3 = vector.shape_cast %2 : vector<1x32x128xf32> to vector<32x128xf32>
    %4 = arith.truncf %1 : vector<32x128xf32> to vector<32x128xbf16>
    %5 = arith.truncf %3 : vector<32x128xf32> to vector<32x128xbf16>
    %c0_5 = arith.constant 0 : index
    %c0_6 = arith.constant 0 : index
    %6 = vector.load %arg5[%c0_5, %c0_6] : memref<16x32xbf16, #tpu.memory_space<vmem>>, vector<16x32xbf16>
    %cst = arith.constant dense<0.000000e+00> : vector<16x128xf32>
    %7 = tpu.matmul %6, %4, %cst {dimension_numbers = #tpu.dot_dimension_numbers<[1], [0], [0], [1], [0, 0, 1, 1], [], []>} : vector<16x32xbf16>, vector<32x128xbf16>, vector<16x128xf32> -> vector<16x128xf32>
    %c0_7 = arith.constant 0 : index
    %c0_8 = arith.constant 0 : index
    %8 = vector.load %arg6[%c0_7, %c0_8] : memref<16x32xbf16, #tpu.memory_space<vmem>>, vector<16x32xbf16>
    %cst_9 = arith.constant dense<0.000000e+00> : vector<16x128xf32>
    %9 = tpu.matmul %8, %5, %cst_9 {dimension_numbers = #tpu.dot_dimension_numbers<[1], [0], [0], [1], [0, 0, 1, 1], [], []>} : vector<16x32xbf16>, vector<32x128xbf16>, vector<16x128xf32> -> vector<16x128xf32>
    %10 = arith.addf %7, %9 : vector<16x128xf32>
    %c0_10 = arith.constant 0 : index
    %c0_11 = arith.constant 0 : index
    %11 = vector.load %arg7[%c0_10, %c0_11] : memref<16x1xf32, #tpu.memory_space<vmem>>, vector<16x1xf32>
    %12 = vector.broadcast %11 : vector<16x1xf32> to vector<16x128xf32>
    %13 = arith.addf %10, %12 : vector<16x128xf32>
    %c0_12 = arith.constant 0 : index
    %c0_13 = arith.constant 0 : index
    %14 = vector.load %arg8[%c0_12, %c0_13] : memref<32x16xbf16, #tpu.memory_space<vmem>>, vector<32x16xbf16>
    %15 = arith.truncf %13 : vector<16x128xf32> to vector<16x128xbf16>
    %cst_14 = arith.constant dense<0.000000e+00> : vector<32x128xf32>
    %16 = tpu.matmul %14, %15, %cst_14 {dimension_numbers = #tpu.dot_dimension_numbers<[1], [0], [0], [1], [0, 0, 1, 1], [], []>} : vector<32x16xbf16>, vector<16x128xbf16>, vector<32x128xf32> -> vector<32x128xf32>
    %c0_15 = arith.constant 0 : index
    %c0_16 = arith.constant 0 : index
    %17 = vector.load %arg9[%c0_15, %c0_16] : memref<32x1xf32, #tpu.memory_space<vmem>>, vector<32x1xf32>
    %18 = vector.broadcast %17 : vector<32x1xf32> to vector<32x128xf32>
    %19 = arith.addf %16, %18 : vector<32x128xf32>
    %c0_17 = arith.constant 0 : index
    %c0_18 = arith.constant 0 : index
    %c0_19 = arith.constant 0 : index
    %20 = vector.load %arg4[%c0_17, %c0_18, %c0_19] : memref<1x32x1xf32, #tpu.memory_space<vmem>>, vector<1x32x1xf32>
    %21 = vector.shape_cast %20 : vector<1x32x1xf32> to vector<32x1xf32>
    %22 = vector.broadcast %21 : vector<32x1xf32> to vector<32x128xf32>
    %23 = arith.addf %22, %19 : vector<32x128xf32>
    %cst_20 = arith.constant 0.000000e+00 : f32
    %24 = vector.broadcast %cst_20 : f32 to vector<32x128xf32>
    %25 = arith.subf %24, %23 : vector<32x128xf32>
    %26 = math.exp %25 : vector<32x128xf32>
    %cst_21 = arith.constant 1.000000e+00 : f32
    %27 = vector.broadcast %cst_21 : f32 to vector<32x128xf32>
    %28 = arith.addf %27, %26 : vector<32x128xf32>
    %29 = tpu.reciprocal %28 {approx = true} : vector<32x128xf32> -> vector<32x128xf32>
    %30 = arith.subf %1, %3 : vector<32x128xf32>
    %31 = arith.mulf %29, %30 : vector<32x128xf32>
    %32 = arith.addf %3, %31 : vector<32x128xf32>
    %c0_22 = arith.constant 0 : index
    %c0_23 = arith.constant 0 : index
    %c0_24 = arith.constant 0 : index
    %33 = vector.load %arg10[%c0_22, %c0_23, %c0_24] : memref<1x32x128xf32, #tpu.memory_space<vmem>>, vector<1x32x128xf32>
    %34 = vector.shape_cast %33 : vector<1x32x128xf32> to vector<32x128xf32>
    %35 = vector.shape_cast %32 : vector<32x128xf32> to vector<1x32x128xf32>
    tpu.vector_store %arg10[%c0_22, %c0_23, %c0_24], %35 {strides = array<i32>} : memref<1x32x128xf32, #tpu.memory_space<vmem>>, vector<1x32x128xf32>,
    return
  }
  func.func @transform_0(%arg0: i32, %arg1: i32) -> (i32, i32, i32) {
    %c0_i32 = arith.constant 0 : i32
    %c0_i32_0 = arith.constant 0 : i32
    return %arg0, %c0_i32, %arg1 : i32, i32, i32
  }
  func.func @transform_1(%arg0: i32, %arg1: i32) -> (i32, i32, i32) {
    %c0_i32 = arith.constant 0 : i32
    %c0_i32_0 = arith.constant 0 : i32
    return %arg0, %c0_i32, %arg1 : i32, i32, i32
  }
  func.func @transform_2(%arg0: i32, %arg1: i32) -> (i32, i32, i32) {
    %c0_i32 = arith.constant 0 : i32
    %c0_i32_0 = arith.constant 0 : i32
    %c0_i32_1 = arith.constant 0 : i32
    return %arg0, %c0_i32, %c0_i32_0 : i32, i32, i32
  }
  func.func @transform_3(%arg0: i32, %arg1: i32) -> (i32, i32) {
    %c0_i32 = arith.constant 0 : i32
    %c0_i32_0 = arith.constant 0 : i32
    %c0_i32_1 = arith.constant 0 : i32
    return %c0_i32, %c0_i32_0 : i32, i32
  }
  func.func @transform_4(%arg0: i32, %arg1: i32) -> (i32, i32) {
    %c0_i32 = arith.constant 0 : i32
    %c0_i32_0 = arith.constant 0 : i32
    %c0_i32_1 = arith.constant 0 : i32
    return %c0_i32, %c0_i32_0 : i32, i32
  }
  func.func @transform_5(%arg0: i32, %arg1: i32) -> (i32, i32) {
    %c0_i32 = arith.constant 0 : i32
    %c0_i32_0 = arith.constant 0 : i32
    %c0_i32_1 = arith.constant 0 : i32
    return %c0_i32, %c0_i32_0 : i32, i32
  }
  func.func @transform_6(%arg0: i32, %arg1: i32) -> (i32, i32) {
    %c0_i32 = arith.constant 0 : i32
    %c0_i32_0 = arith.constant 0 : i32
    %c0_i32_1 = arith.constant 0 : i32
    return %c0_i32, %c0_i32_0 : i32, i32
  }
  func.func @transform_7(%arg0: i32, %arg1: i32) -> (i32, i32) {
    %c0_i32 = arith.constant 0 : i32
    %c0_i32_0 = arith.constant 0 : i32
    %c0_i32_1 = arith.constant 0 : i32
    return %c0_i32, %c0_i32_0 : i32, i32
  }
  func.func @transform_8(%arg0: i32, %arg1: i32) -> (i32, i32, i32) {
    %c0_i32 = arith.constant 0 : i32
    %c0_i32_0 = arith.constant 0 : i32
    return %arg0, %c0_i32, %arg1 : i32, i32, i32
  }
}

</mosaic_0001>

<llo_original>
// kernel: tpu_custom_call.1
$region0: #{tpu_custom_call.1}
  #allocation0 [shape = 'u32[]', space=smem, size = 0x4, offset = 0x4, fixed_abs, tag = 'smem constant byte address 0x4 - core index']
  #allocation1 [shape = 'u32[144,128]{1,0:T(1,128)}', space=vmem, size = 0x12000, scoped, tag = 'internal scratch']
  %s0 = inlined_call_operand.vmem [shape: f32[2,32,256], index: 0, kind: input, shape index: {}]
  %s1 = inlined_call_operand.hbm [shape: f32[2,32,256], index: 1, kind: input, shape index: {}]
  %s2 = inlined_call_operand.vmem [shape: f32[2,32,1], index: 2, kind: input, shape index: {}]
  %s3 = inlined_call_operand.vmem [shape: bf16[16,32], index: 3, kind: input, shape index: {}]
  %s4 = inlined_call_operand.vmem [shape: bf16[16,32], index: 4, kind: input, shape index: {}]
  %s5 = inlined_call_operand.vmem [shape: f32[16,1], index: 5, kind: input, shape index: {}]
  %s6 = inlined_call_operand.vmem [shape: bf16[32,16], index: 6, kind: input, shape index: {}]
  %s7 = inlined_call_operand.vmem [shape: f32[32,1], index: 7, kind: input, shape index: {}]
  %s8 = inlined_call_operand.hbm [shape: f32[2,32,256], index: 8, kind: output, shape index: {}]
  %s9 = sld [smem:[#allocation0]]
  $region107: #{tpu_custom_call.1} parent=0
    _
  %s11 = ssub.s32 1, %s9
  %s12 = scalar_select 0, %s11, %s9
  $region1: #{tpu_custom_call.1} parent=0
    #allocation2 [shape = 'u8[32768]{0}', space=vmem, size = 0x8000, scoped, tag = 'input window, operand 0']
    #allocation3 [shape = 'u8[32768]{0}', space=vmem, size = 0x8000, scoped, tag = 'input window, operand 1']
    #allocation4 [shape = 's32[2]{0}', space=sflag, size = 0x8, scoped, tag = 'scoped memory for tpu_custom_call.1']
    #allocation5 [shape = 's32[2]{0}', space=sflag, size = 0x8, scoped, tag = 'scoped memory for tpu_custom_call.1']
    #allocation6 [shape = 'u8[32768]{0}', space=vmem, size = 0x8000, scoped, tag = 'output window, operand 0']
    %13 = vsyncpa [#allocation4], 0
    %s14 = scalar_lea.sflag [#allocation4], 1
    %15 = vsyncpa %s14, 0
    %16 = vsyncpa [#allocation5], 0
    %s17 = scalar_lea.sflag [#allocation5], 1
    %18 = vsyncpa %s17, 0
    loop: start=0, step=1, limit=6
    $region2: #{tpu_custom_call.1} parent=1 // loop_pre_header
      _
    $region3: #{tpu_custom_call.1} parent=1 // loop_header
      %s20 = sphi 0, %s24
      %p21 = scmp.ge.s32.totalorder %s20, 6
      %s27 = sphi 0, %s39
      %s28 = sphi 0, %s35
      %s29 = sphi 0, %s27
      %s30 = sphi 0, %s28
      %s31 = sphi 0, %s29
      %s32 = sphi 0, %s30
      %s44 = sphi 0, %s46
      %s47 = sphi 0, %s44
      %s48 = sphi 0, %s47
      %s64 = sphi 0, %s48
      %s72 = sphi 0, %s74
      %s75 = sphi 0, %s72
      %s76 = sphi 0, %s75
      %s92 = sphi 0, %s76
      %s98 = sphi 0, %s100
      %s101 = sphi 0, %s98
      %s102 = sphi 0, %s101
      %s118 = sphi 0, %s102
      %s122 = sphi 0, %s122
      %s124 = sphi 0, %s122
      %s125 = sphi 0, %s124
      %s139 = sphi 0, %s125
      %s143 = sphi 0, %s143
      %s145 = sphi 0, %s143
      %s146 = sphi 0, %s145
      %s160 = sphi 0, %s146
      %s164 = sphi 0, %s164
      %s166 = sphi 0, %s164
      %s167 = sphi 0, %s166
      %s181 = sphi 0, %s167
      %s185 = sphi 0, %s185
      %s187 = sphi 0, %s185
      %s188 = sphi 0, %s187
      %s202 = sphi 0, %s188
      %s206 = sphi 0, %s206
      %s208 = sphi 0, %s206
      %s209 = sphi 0, %s208
      %s223 = sphi 0, %s209
      %s231 = sphi 0, %s233
      %s234 = sphi 0, %s231
      %s235 = sphi 0, %s234
      %s251 = sphi 0, %s235
    $region4: #{tpu_custom_call.1} parent=1 // loop_header_branch
      %23 = sbr.rel (%p21) target = $region8
    $region5: #{tpu_custom_call.1} parent=1 // loop_body
      %s25 = ssub.s32 %s20, 1
      %s26 = ssub.s32 %s20, 2
      %s33 = sadd.s32 1, %s28
      %p34 = scmp.ge.s32.totalorder %s33, 2
      %s35 = scalar_select %p34, 0, %s33
      %s36 = sadd.s32 1, %s27
      %s37 = scalar_select %p34, %s36, %s27
      %p38 = scmp.ge.s32.totalorder %s37, 2
      %s39 = scalar_select %p38, 0, %s37
      %s40 = ssub.s32 %s27, %s39
      %s41 = ssub.s32 %s28, %s35
      %s42 = sor.u32 %s40, %s41
      %p43 = scmp.eq.s32.totalorder %s42, 0
      %s45 = sadd.s32 %s44, 1
      %s46 = scalar_select %p43, %s44, %s45
      %p49 = pneg %p43
      %p50 = scmp.eq.s32.totalorder %s20, 3
      %p51 = por %p49, %p50
      %p52 = scmp.ne.s32.totalorder %s44, %s47
      %p53 = scmp.eq.s32.totalorder %s20, 0
      %p54 = por %p52, %p53
      %p55 = scmp.ne.s32.totalorder %s44, %s47
      %p56 = scmp.eq.s32.totalorder %s25, 3
      %p57 = por %p55, %p56
      %p58 = scmp.ne.s32.totalorder %s47, %s48
      %p59 = scmp.eq.s32.totalorder %s25, 0
      %p60 = por %p58, %p59
      %p61 = scmp.ne.s32.totalorder %s47, %s48
      %p62 = scmp.eq.s32.totalorder %s26, 3
      %p63 = por %p61, %p62
      %p65 = scmp.ne.s32.totalorder %s48, %s64
      %p66 = scmp.eq.s32.totalorder %s26, 0
      %p67 = por %p65, %p66
      %s68 = ssub.s32 %s27, %s39
      %s69 = ssub.s32 %s28, %s35
      %s70 = sor.u32 %s68, %s69
      %p71 = scmp.eq.s32.totalorder %s70, 0
      %s73 = sadd.s32 %s72, 1
      %s74 = scalar_select %p71, %s72, %s73
      %p77 = pneg %p71
      %p78 = scmp.eq.s32.totalorder %s20, 3
      %p79 = por %p77, %p78
      %p80 = scmp.ne.s32.totalorder %s72, %s75
      %p81 = scmp.eq.s32.totalorder %s20, 0
      %p82 = por %p80, %p81
      %p83 = scmp.ne.s32.totalorder %s72, %s75
      %p84 = scmp.eq.s32.totalorder %s25, 3
      %p85 = por %p83, %p84
      %p86 = scmp.ne.s32.totalorder %s75, %s76
      %p87 = scmp.eq.s32.totalorder %s25, 0
      %p88 = por %p86, %p87
      %p89 = scmp.ne.s32.totalorder %s75, %s76
      %p90 = scmp.eq.s32.totalorder %s26, 3
      %p91 = por %p89, %p90
      %p93 = scmp.ne.s32.totalorder %s76, %s92
      %p94 = scmp.eq.s32.totalorder %s26, 0
      %p95 = por %p93, %p94
      %s96 = ssub.s32 %s27, %s39
      %p97 = scmp.eq.s32.totalorder %s96, 0
      %s99 = sadd.s32 %s98, 1
      %s100 = scalar_select %p97, %s98, %s99
      %p103 = pneg %p97
      %p104 = scmp.eq.s32.totalorder %s20, 3
      %p105 = por %p103, %p104
      %p106 = scmp.ne.s32.totalorder %s98, %s101
      %p107 = scmp.eq.s32.totalorder %s20, 0
      %p108 = por %p106, %p107
      %p109 = scmp.ne.s32.totalorder %s98, %s101
      %p110 = scmp.eq.s32.totalorder %s25, 3
      %p111 = por %p109, %p110
      %p112 = scmp.ne.s32.totalorder %s101, %s102
      %p113 = scmp.eq.s32.totalorder %s25, 0
      %p114 = por %p112, %p113
      %p115 = scmp.ne.s32.totalorder %s101, %s102
      %p116 = scmp.eq.s32.totalorder %s26, 3
      %p117 = por %p115, %p116
      %p119 = scmp.ne.s32.totalorder %s102, %s118
      %p120 = scmp.eq.s32.totalorder %s26, 0
      %p121 = por %p119, %p120
      %s123 = sadd.s32 %s122, 1
      %p126 = scmp.eq.s32.totalorder %s20, 3
      %p127 = scmp.ne.s32.totalorder %s122, %s124
      %p128 = scmp.eq.s32.totalorder %s20, 0
      %p129 = por %p127, %p128
      %p130 = scmp.ne.s32.totalorder %s122, %s124
      %p131 = scmp.eq.s32.totalorder %s25, 3
      %p132 = por %p130, %p131
      %p133 = scmp.ne.s32.totalorder %s124, %s125
      %p134 = scmp.eq.s32.totalorder %s25, 0
      %p135 = por %p133, %p134
      %p136 = scmp.ne.s32.totalorder %s124, %s125
      %p137 = scmp.eq.s32.totalorder %s26, 3
      %p138 = por %p136, %p137
      %p140 = scmp.ne.s32.totalorder %s125, %s139
      %p141 = scmp.eq.s32.totalorder %s26, 0
      %p142 = por %p140, %p141
      %s144 = sadd.s32 %s143, 1
      %p147 = scmp.eq.s32.totalorder %s20, 3
      %p148 = scmp.ne.s32.totalorder %s143, %s145
      %p149 = scmp.eq.s32.totalorder %s20, 0
      %p150 = por %p148, %p149
      %p151 = scmp.ne.s32.totalorder %s143, %s145
      %p152 = scmp.eq.s32.totalorder %s25, 3
      %p153 = por %p151, %p152
      %p154 = scmp.ne.s32.totalorder %s145, %s146
      %p155 = scmp.eq.s32.totalorder %s25, 0
      %p156 = por %p154, %p155
      %p157 = scmp.ne.s32.totalorder %s145, %s146
      %p158 = scmp.eq.s32.totalorder %s26, 3
      %p159 = por %p157, %p158
      %p161 = scmp.ne.s32.totalorder %s146, %s160
      %p162 = scmp.eq.s32.totalorder %s26, 0
      %p163 = por %p161, %p162
      %s165 = sadd.s32 %s164, 1
      %p168 = scmp.eq.s32.totalorder %s20, 3
      %p169 = scmp.ne.s32.totalorder %s164, %s166
      %p170 = scmp.eq.s32.totalorder %s20, 0
      %p171 = por %p169, %p170
      %p172 = scmp.ne.s32.totalorder %s164, %s166
      %p173 = scmp.eq.s32.totalorder %s25, 3
      %p174 = por %p172, %p173
      %p175 = scmp.ne.s32.totalorder %s166, %s167
      %p176 = scmp.eq.s32.totalorder %s25, 0
      %p177 = por %p175, %p176
      %p178 = scmp.ne.s32.totalorder %s166, %s167
      %p179 = scmp.eq.s32.totalorder %s26, 3
      %p180 = por %p178, %p179
      %p182 = scmp.ne.s32.totalorder %s167, %s181
      %p183 = scmp.eq.s32.totalorder %s26, 0
      %p184 = por %p182, %p183
      %s186 = sadd.s32 %s185, 1
      %p189 = scmp.eq.s32.totalorder %s20, 3
      %p190 = scmp.ne.s32.totalorder %s185, %s187
      %p191 = scmp.eq.s32.totalorder %s20, 0
      %p192 = por %p190, %p191
      %p193 = scmp.ne.s32.totalorder %s185, %s187
      %p194 = scmp.eq.s32.totalorder %s25, 3
      %p195 = por %p193, %p194
      %p196 = scmp.ne.s32.totalorder %s187, %s188
      %p197 = scmp.eq.s32.totalorder %s25, 0
      %p198 = por %p196, %p197
      %p199 = scmp.ne.s32.totalorder %s187, %s188
      %p200 = scmp.eq.s32.totalorder %s26, 3
      %p201 = por %p199, %p200
      %p203 = scmp.ne.s32.totalorder %s188, %s202
      %p204 = scmp.eq.s32.totalorder %s26, 0
      %p205 = por %p203, %p204
      %s207 = sadd.s32 %s206, 1
      %p210 = scmp.eq.s32.totalorder %s20, 3
      %p211 = scmp.ne.s32.totalorder %s206, %s208
      %p212 = scmp.eq.s32.totalorder %s20, 0
      %p213 = por %p211, %p212
      %p214 = scmp.ne.s32.totalorder %s206, %s208
      %p215 = scmp.eq.s32.totalorder %s25, 3
      %p216 = por %p214, %p215
      %p217 = scmp.ne.s32.totalorder %s208, %s209
      %p218 = scmp.eq.s32.totalorder %s25, 0
      %p219 = por %p217, %p218
      %p220 = scmp.ne.s32.totalorder %s208, %s209
      %p221 = scmp.eq.s32.totalorder %s26, 3
      %p222 = por %p220, %p221
      %p224 = scmp.ne.s32.totalorder %s209, %s223
      %p225 = scmp.eq.s32.totalorder %s26, 0
      %p226 = por %p224, %p225
      %s227 = ssub.s32 %s27, %s39
      %s228 = ssub.s32 %s28, %s35
      %s229 = sor.u32 %s227, %s228
      %p230 = scmp.eq.s32.totalorder %s229, 0
      %s232 = sadd.s32 %s231, 1
      %s233 = scalar_select %p230, %s231, %s232
      %p236 = pneg %p230
      %p237 = scmp.eq.s32.totalorder %s20, 3
      %p238 = por %p236, %p237
      %p239 = scmp.ne.s32.totalorder %s231, %s234
      %p240 = scmp.eq.s32.totalorder %s20, 0
      %p241 = por %p239, %p240
      %p242 = scmp.ne.s32.totalorder %s231, %s234
      %p243 = scmp.eq.s32.totalorder %s25, 3
      %p244 = por %p242, %p243
      %p245 = scmp.ne.s32.totalorder %s234, %s235
      %p246 = scmp.eq.s32.totalorder %s25, 0
      %p247 = por %p245, %p246
      %p248 = scmp.ne.s32.totalorder %s234, %s235
      %p249 = scmp.eq.s32.totalorder %s26, 3
      %p250 = por %p248, %p249
      %p252 = scmp.ne.s32.totalorder %s235, %s251
      %p253 = scmp.eq.s32.totalorder %s26, 0
      %p254 = por %p252, %p253
      %p255 = scmp.le.s32.totalorder 1, %s20
      %p256 = scmp.lt.s32.totalorder %s20, 5
      %p257 = pnand %p255, %p256
      %p258 = pneg %p257
      // Predicated region
      $region9: #{tpu_custom_call.1} parent=5 // pred_check
        _
      $region10: #{tpu_custom_call.1} parent=5 // pred_check_branch
        %260 = sbr.rel (%p257) target = $region12
      $region11: #{tpu_custom_call.1} parent=5 // pred_region
        %s261 = ssub.s32 %s20, 1
        // Predicated region
        $region13: #{tpu_custom_call.1} parent=11 // pred_check
          %p262 = pneg %p135
        $region14: #{tpu_custom_call.1} parent=11 // pred_check_branch
          %264 = sbr.rel (%p262) target = $region16
        $region15: #{tpu_custom_call.1} parent=11 // pred_region
          _
        $region16: #{tpu_custom_call.1} parent=11 // pred_fallthru
          _
        // Predicated region
        $region17: #{tpu_custom_call.1} parent=11 // pred_check
          %p265 = pneg %p156
        $region18: #{tpu_custom_call.1} parent=11 // pred_check_branch
          %267 = sbr.rel (%p265) target = $region20
        $region19: #{tpu_custom_call.1} parent=11 // pred_region
          _
        $region20: #{tpu_custom_call.1} parent=11 // pred_fallthru
          _
        // Predicated region
        $region21: #{tpu_custom_call.1} parent=11 // pred_check
          %p268 = pneg %p177
        $region22: #{tpu_custom_call.1} parent=11 // pred_check_branch
          %270 = sbr.rel (%p268) target = $region24
        $region23: #{tpu_custom_call.1} parent=11 // pred_region
          _
        $region24: #{tpu_custom_call.1} parent=11 // pred_fallthru
          _
        // Predicated region
        $region25: #{tpu_custom_call.1} parent=11 // pred_check
          %p271 = pneg %p198
        $region26: #{tpu_custom_call.1} parent=11 // pred_check_branch
          %273 = sbr.rel (%p271) target = $region28
        $region27: #{tpu_custom_call.1} parent=11 // pred_region
          _
        $region28: #{tpu_custom_call.1} parent=11 // pred_fallthru
          _
        // Predicated region
        $region29: #{tpu_custom_call.1} parent=11 // pred_check
          %p274 = pneg %p219
        $region30: #{tpu_custom_call.1} parent=11 // pred_check_branch
          %276 = sbr.rel (%p274) target = $region32
        $region31: #{tpu_custom_call.1} parent=11 // pred_region
          _
        $region32: #{tpu_custom_call.1} parent=11 // pred_fallthru
          _
      $region12: #{tpu_custom_call.1} parent=5 // pred_fallthru
        _
      %p277 = scmp.lt.s32.totalorder %s20, 4
      // Predicated region
      $region33: #{tpu_custom_call.1} parent=5 // pred_check
        %p278 = pneg %p277
      $region34: #{tpu_custom_call.1} parent=5 // pred_check_branch
        %280 = sbr.rel (%p278) target = $region36
      $region35: #{tpu_custom_call.1} parent=5 // pred_region
        // Predicated region
        $region37: #{tpu_custom_call.1} parent=35 // pred_check
          %p281 = pneg %p54
        $region38: #{tpu_custom_call.1} parent=35 // pred_check_branch
          %283 = sbr.rel (%p281) target = $region40
        $region39: #{tpu_custom_call.1} parent=35 // pred_region
          %s284 = sand.u32 %s44, 1
          %s285 = sand.u32 %s44, 1
          %s286 = smul.addr %s285, 32
          %s287 = scalar_lea.vmem [#allocation2], %s286
          %s288 = smul.addr %s27, 8
          %s289 = sadd.s32 %s28, %s288
          %s290 = smul.addr %s289, 8
          %s291 = scalar_lea.vmem %s0, %s290
          // Predicated region
          $region41: #{tpu_custom_call.1} parent=39 // pred_check
            _
          $region42: #{tpu_custom_call.1} parent=39 // pred_check_branch
            %293 = sbr.rel (0) target = $region44
          $region43: #{tpu_custom_call.1} parent=39 // pred_region
            // Predicated region
            $region45: #{tpu_custom_call.1} parent=43 // pred_check
              _
            $region46: #{tpu_custom_call.1} parent=43 // pred_check_branch
              %295 = sbr.rel (0) target = $region48
            $region47: #{tpu_custom_call.1} parent=43 // pred_region
              // Predicated region
              $region60: #{tpu_custom_call.1} parent=47 // pred_check
                _
              $region61: #{tpu_custom_call.1} parent=47 // pred_check_branch
                %316 = sbr.rel (0) target = $region63
              $region62: #{tpu_custom_call.1} parent=47 // pred_region
                loop: start=0, step=1, limit=1
                $region64: #{tpu_custom_call.1} parent=62 // loop_pre_header
                  _
                $region65: #{tpu_custom_call.1} parent=62 // loop_header
                  %s318 = sphi 0, %s322
                  %p319 = scmp.ge.s32.totalorder %s318, 1
                  %s323 = sphi %s291, %s291
                  %s324 = sphi %s287, %s287
                $region66: #{tpu_custom_call.1} parent=62 // loop_header_branch
                  %321 = sbr.rel (%p319) target = $region70
                $region67: #{tpu_custom_call.1} parent=62 // loop_body
                  %v325 = vld [vmem:[%s323] sm:$0xff]
                  %326 = vst [vmem:[%s324] sm:$0xff] %v325
                  %v327 = vld [vmem:[%s323 + $0x10] sm:$0xff]
                  %328 = vst [vmem:[%s324 + $0x8] sm:$0xff] %v327
                  %v329 = vld [vmem:[%s323 + $0x20] sm:$0xff]
                  %330 = vst [vmem:[%s324 + $0x10] sm:$0xff] %v329
                  %v331 = vld [vmem:[%s323 + $0x30] sm:$0xff]
                  %332 = vst [vmem:[%s324 + $0x18] sm:$0xff] %v331
                $region68: #{tpu_custom_call.1} parent=62 // loop_footer
                  %s322 = sadd.s32 1, %s318
                $region69: #{tpu_custom_call.1} parent=62 // loop_footer_branch
                  %317 = sbr.rel target = $region65
                $region70: #{tpu_custom_call.1} parent=62 // loop_exit
                  _
              $region63: #{tpu_custom_call.1} parent=47 // pred_fallthru
                _
              // Predicated region
              $region71: #{tpu_custom_call.1} parent=47 // pred_check
                _
              $region72: #{tpu_custom_call.1} parent=47 // pred_check_branch
                %334 = sbr.rel target = $region74
              $region73: #{tpu_custom_call.1} parent=47 // pred_region
                _
              $region74: #{tpu_custom_call.1} parent=47 // pred_fallthru
                _
            $region48: #{tpu_custom_call.1} parent=43 // pred_fallthru
              _
            // Predicated region
            $region49: #{tpu_custom_call.1} parent=43 // pred_check
              _
            $region50: #{tpu_custom_call.1} parent=43 // pred_check_branch
              %297 = sbr.rel target = $region52
            $region51: #{tpu_custom_call.1} parent=43 // pred_region
              loop: start=0, step=1, limit=1
              $region53: #{tpu_custom_call.1} parent=51 // loop_pre_header
                _
              $region54: #{tpu_custom_call.1} parent=51 // loop_header
                %s300 = sphi 0, %s304
                %p301 = scmp.ge.s32.totalorder %s300, 1
                %s305 = sphi %s291, %s291
                %s306 = sphi %s287, %s287
              $region55: #{tpu_custom_call.1} parent=51 // loop_header_branch
                %303 = sbr.rel (%p301) target = $region59
              $region56: #{tpu_custom_call.1} parent=51 // loop_body
                %v307 = vld [vmem:[%s305] sm:$0xff]
                %308 = vst [vmem:[%s306] sm:$0xff] %v307
                %v309 = vld [vmem:[%s305 + $0x10] sm:$0xff]
                %310 = vst [vmem:[%s306 + $0x8] sm:$0xff] %v309
                %v311 = vld [vmem:[%s305 + $0x20] sm:$0xff]
                %312 = vst [vmem:[%s306 + $0x10] sm:$0xff] %v311
                %v313 = vld [vmem:[%s305 + $0x30] sm:$0xff]
                %314 = vst [vmem:[%s306 + $0x18] sm:$0xff] %v313
              $region57: #{tpu_custom_call.1} parent=51 // loop_footer
                %s304 = sadd.s32 1, %s300
              $region58: #{tpu_custom_call.1} parent=51 // loop_footer_branch
                %299 = sbr.rel target = $region54
              $region59: #{tpu_custom_call.1} parent=51 // loop_exit
                _
            $region52: #{tpu_custom_call.1} parent=43 // pred_fallthru
              _
          $region44: #{tpu_custom_call.1} parent=39 // pred_fallthru
            _
          %335 = vnop
        $region40: #{tpu_custom_call.1} parent=35 // pred_fallthru
          _
        // Predicated region
        $region75: #{tpu_custom_call.1} parent=35 // pred_check
          %p336 = pneg %p82
        $region76: #{tpu_custom_call.1} parent=35 // pred_check_branch
          %338 = sbr.rel (%p336) target = $region78
        $region77: #{tpu_custom_call.1} parent=35 // pred_region
          %s339 = sand.u32 %s72, 1
          %s340 = scalar_lea.sflag [#allocation4], %s339
          %s341 = sand.u32 %s72, 1
          %s342 = smul.addr %s341, 32
          %s343 = scalar_lea.vmem [#allocation3], %s342
          %s345 = ssub.s32 512, 512
          %346 = vsyncadd %s340, %s345
          %s347 = smul.addr %s27, 8
          %s348 = sadd.s32 %s28, %s347
          %s349 = smul.addr %s348, 128
          %s350 = scalar_lea.hbm %s1, %s349
          %s351 = sshll.u32 %s343, 4
          %s352 = int_to_ptr.vmem [resolvable:$true] %s351
          %357 = dma.hbm_to_vmem [thread:$0]  %s350, 512, %s352, %s340, 256, 128, 8
        $region78: #{tpu_custom_call.1} parent=35 // pred_fallthru
          _
        // Predicated region
        $region79: #{tpu_custom_call.1} parent=35 // pred_check
          %p358 = pneg %p108
        $region80: #{tpu_custom_call.1} parent=35 // pred_check_branch
          %360 = sbr.rel (%p358) target = $region82
        $region81: #{tpu_custom_call.1} parent=35 // pred_region
          %p361 = scmp.lt.s32.totalorder %s27, 1
          %s362 = scalar_select %p361, %s27, 1
          %s363 = smul.addr %s362, 4
          %s364 = smul.addr %s363, 8
          %s365 = scalar_lea.vmem %s2, %s364
        $region82: #{tpu_custom_call.1} parent=35 // pred_fallthru
          _
      $region36: #{tpu_custom_call.1} parent=5 // pred_fallthru
        _
      %p366 = scmp.le.s32.totalorder 1, %s20
      %p367 = scmp.lt.s32.totalorder %s20, 5
      %p368 = pnand %p366, %p367
      %p369 = pneg %p368
      // Predicated region
      $region83: #{tpu_custom_call.1} parent=5 // pred_check
        _
      $region84: #{tpu_custom_call.1} parent=5 // pred_check_branch
        %371 = sbr.rel (%p368) target = $region86
      $region85: #{tpu_custom_call.1} parent=5 // pred_region
        %s372 = ssub.s32 %s20, 1
        %s373 = sand.u32 %s47, 1
        %s374 = sand.u32 %s47, 1
        %s375 = smul.addr %s374, 32
        %s376 = scalar_lea.vmem [#allocation2], %s375
        // Predicated region
        $region87: #{tpu_custom_call.1} parent=85 // pred_check
          %p377 = pneg %p60
        $region88: #{tpu_custom_call.1} parent=85 // pred_check_branch
          %379 = sbr.rel (%p377) target = $region90
        $region89: #{tpu_custom_call.1} parent=85 // pred_region
          _
        $region90: #{tpu_custom_call.1} parent=85 // pred_fallthru
          _
        %s380 = sand.u32 %s75, 1
        %s381 = scalar_lea.sflag [#allocation4], %s380
        %s382 = sand.u32 %s75, 1
        %s383 = smul.addr %s382, 32
        %s384 = scalar_lea.vmem [#allocation3], %s383
        // Predicated region
        $region91: #{tpu_custom_call.1} parent=85 // pred_check
          %p385 = pneg %p88
        $region92: #{tpu_custom_call.1} parent=85 // pred_check_branch
          %387 = sbr.rel (%p385) target = $region94
        $region93: #{tpu_custom_call.1} parent=85 // pred_region
          %388 = dma.done %s381, 512
        $region94: #{tpu_custom_call.1} parent=85 // pred_fallthru
          _
        %s389 = sand.u32 %s47, 1
        %s390 = sand.u32 %s47, 1
        %s391 = smul.addr %s390, 32
        %s392 = scalar_lea.vmem [#allocation2], %s391
        %p393 = pneg %p60
        %p394 = pneg %p57
        %s395 = sand.u32 %s75, 1
        %s396 = scalar_lea.sflag [#allocation4], %s395
        %s397 = sand.u32 %s75, 1
        %s398 = smul.addr %s397, 32
        %s399 = scalar_lea.vmem [#allocation3], %s398
        %p400 = pneg %p88
        %p401 = pneg %p85
        %p402 = scmp.lt.s32.totalorder %s29, 1
        %s403 = scalar_select %p402, %s29, 1
        %s404 = smul.addr %s403, 4
        %s405 = smul.addr %s404, 8
        %s406 = scalar_lea.vmem %s2, %s405
        %p407 = pneg %p114
        %p408 = pneg %p111
        %p409 = pneg %p135
        %p410 = pneg %p132
        %p411 = pneg %p156
        %p412 = pneg %p153
        %p413 = pneg %p177
        %p414 = pneg %p174
        %p415 = pneg %p198
        %p416 = pneg %p195
        %p417 = pneg %p219
        %p418 = pneg %p216
        %p419 = pneg %p247
        %p420 = pneg %p244
        %s421 = sand.u32 %s234, 1
        %s422 = scalar_lea.sflag [#allocation5], %s421
        %s423 = sand.u32 %s234, 1
        %s424 = smul.addr %s423, 32
        %s425 = scalar_lea.vmem [#allocation6], %s424
        %p426 = scmp.lt.s32.totalorder %s29, 1
        %s427 = scalar_select %p426, %s29, 1
        %s428 = smul.addr %s427, 4
        %s429 = smul.addr %s428, 8
        %s430 = scalar_lea.vmem %s2, %s429
        %v432 = vld [vmem:[%s376] sm:$0xff]
        %v433 = vld [vmem:[%s376 + $0x8] sm:$0xff]
        %v434 = vld [vmem:[%s376 + $0x10] sm:$0xff]
        %v435 = vld [vmem:[%s376 + $0x18] sm:$0xff]
        %v436 = vld [vmem:[%s384] sm:$0xff]
        %v437 = vld [vmem:[%s384 + $0x8] sm:$0xff]
        %v438 = vld [vmem:[%s384 + $0x10] sm:$0xff]
        %v439 = vld [vmem:[%s384 + $0x18] sm:$0xff]
        %v440 = vpack.c.bf16 %v433, %v432
        %v441 = vpack.c.bf16 %v435, %v434
        %v442 = vpack.c.bf16 %v437, %v436
        %v443 = vpack.c.bf16 %v439, %v438
        %v444 = vld [vmem:[%s3] sm:$0xf]
        %v445 = vld [vmem:[%s3 + $0x4] sm:$0xf]
        %v446 = vld [vmem:[%s4] sm:$0xf]
        %v447 = vld [vmem:[%s4 + $0x4] sm:$0xf]
        %v450 = vunpack.c.l.b16 %v446
        %v451 = vunpack.c.l.b16 %v447
        %v452 = vpack.c.b16 %v451, %v450
        %vm453 = vcmask 261120
        %v455 = vsel %vm453, %v452, 0
        %457 = vmatprep.subr.bf16.mxu0 0
        %458 = vmatpush1.bf16.msra.mxu0 %v442
        %459 = vmatprep.subr.bf16.mxu0 0
        %460 = vmatpush1.bf16.msra.mxu0 %v443
        %461 = vmatprep.subr.bf16.mxu0 0
        %462 = vmatpush1.bf16.msra.mxu0 0
        %463 = vmatprep.subr.bf16.mxu0 0
        %464 = vmatpush1.bf16.msra.mxu0 0
        %465 = vmatprep.subr.bf16.mxu0 0
        %466 = vmatpush1.bf16.msra.mxu0 0
        %467 = vmatprep.subr.bf16.mxu0 0
        %468 = vmatpush1.bf16.msra.mxu0 0
        %469 = vmatprep.subr.bf16.mxu0 0
        %470 = vmatpush1.bf16.msra.mxu0 0
        %471 = vmatprep.subr.bf16.mxu0 0
        %472 = vmatpush1.bf16.msra.mxu0 0
        %473 = vmatprep.subr.bf16.mxu0 0
        %474 = vmatpush1.bf16.msra.mxu0 0
        %475 = vmatprep.subr.bf16.mxu0 0
        %476 = vmatpush1.bf16.msra.mxu0 0
        %477 = vmatprep.subr.bf16.mxu0 0
        %478 = vmatpush1.bf16.msra.mxu0 0
        %479 = vmatprep.subr.bf16.mxu0 0
        %480 = vmatpush1.bf16.msra.mxu0 0
        %481 = vmatprep.subr.bf16.mxu0 0
        %482 = vmatpush1.bf16.msra.mxu0 0
        %483 = vmatprep.subr.bf16.mxu0 0
        %484 = vmatpush1.bf16.msra.mxu0 0
        %485 = vmatprep.subr.bf16.mxu0 0
        %486 = vmatpush1.bf16.msra.mxu0 0
        %487 = vmatprep.subr.bf16.mxu0 0
        %488 = vmatpush1.bf16.msra.mxu0 0
        %489 = vmatprep.mubr.bf16.mxu0 0
        %490 = vmatmul.mubr.bf16.gmra.mrb[0].mxu0 %v455
        %v491 = vpop.f32.mrb[0].mxu0
        %v492 = vadd.f32 0.0, %v491
        %v493 = vpop.f32.mrb[0].mxu0
        %v494 = vpop.f32.mrb[0].mxu0
        %v495 = vadd.f32 0.0, %v494
        %v496 = vpop.f32.mrb[0].mxu0
        %497 = vdwg.mxu0
        %v500 = vunpack.c.l.b16 %v444
        %v501 = vunpack.c.l.b16 %v445
        %v502 = vpack.c.b16 %v501, %v500
        %v504 = vsel %vm453, %v502, 0
        %506 = vmatprep.subr.bf16.mxu0 0
        %507 = vmatpush1.bf16.msra.mxu0 %v440
        %508 = vmatprep.subr.bf16.mxu0 0
        %509 = vmatpush1.bf16.msra.mxu0 %v441
        %510 = vmatprep.subr.bf16.mxu0 0
        %511 = vmatpush1.bf16.msra.mxu0 0
        %512 = vmatprep.subr.bf16.mxu0 0
        %513 = vmatpush1.bf16.msra.mxu0 0
        %514 = vmatprep.subr.bf16.mxu0 0
        %515 = vmatpush1.bf16.msra.mxu0 0
        %516 = vmatprep.subr.bf16.mxu0 0
        %517 = vmatpush1.bf16.msra.mxu0 0
        %518 = vmatprep.subr.bf16.mxu0 0
        %519 = vmatpush1.bf16.msra.mxu0 0
        %520 = vmatprep.subr.bf16.mxu0 0
        %521 = vmatpush1.bf16.msra.mxu0 0
        %522 = vmatprep.subr.bf16.mxu0 0
        %523 = vmatpush1.bf16.msra.mxu0 0
        %524 = vmatprep.subr.bf16.mxu0 0
        %525 = vmatpush1.bf16.msra.mxu0 0
        %526 = vmatprep.subr.bf16.mxu0 0
        %527 = vmatpush1.bf16.msra.mxu0 0
        %528 = vmatprep.subr.bf16.mxu0 0
        %529 = vmatpush1.bf16.msra.mxu0 0
        %530 = vmatprep.subr.bf16.mxu0 0
        %531 = vmatpush1.bf16.msra.mxu0 0
        %532 = vmatprep.subr.bf16.mxu0 0
        %533 = vmatpush1.bf16.msra.mxu0 0
        %534 = vmatprep.subr.bf16.mxu0 0
        %535 = vmatpush1.bf16.msra.mxu0 0
        %536 = vmatprep.subr.bf16.mxu0 0
        %537 = vmatpush1.bf16.msra.mxu0 0
        %538 = vmatprep.mubr.bf16.mxu0 0
        %539 = vmatmul.mubr.bf16.gmra.mrb[0].mxu0 %v504
        %v540 = vpop.f32.mrb[0].mxu0
        %v541 = vadd.f32 %v492, %v540
        %v542 = vpop.f32.mrb[0].mxu0
        %v543 = vpop.f32.mrb[0].mxu0
        %v544 = vadd.f32 %v495, %v543
        %v545 = vpop.f32.mrb[0].mxu0
        %546 = vdwg.mxu0
        %v547 = vld [vmem:[%s5] sm:$0xff]
        %v548 = vld [vmem:[%s5 + $0x8] sm:$0xff]
        %550 = vset.pattern.permute.xlu0 0
        %551 = vperm.xlu0 %550, %v547
        %v552 = vpop.permute.xlu0 %551
        %555 = vset.pattern.permute.xlu0 0
        %556 = vperm.xlu0 %555, %v548
        %v557 = vpop.permute.xlu0 %556
        %v559 = vadd.f32 %v541, %v552
        %v560 = vadd.f32 %v544, %v557
        %v561 = vld [vmem:[%s6] sm:$0xf]
        %v562 = vld [vmem:[%s6 + $0x4] sm:$0xf]
        %v563 = vld [vmem:[%s6 + $0x8] sm:$0xf]
        %v564 = vld [vmem:[%s6 + $0xc] sm:$0xf]
        %v565 = vpack.c.bf16 %v560, %v559
        %v566 = vld [vmem:[%s7] sm:$0xff]
        %v567 = vld [vmem:[%s7 + $0x8] sm:$0xff]
        %v568 = vld [vmem:[%s7 + $0x10] sm:$0xff]
        %v569 = vld [vmem:[%s7 + $0x18] sm:$0xff]
        %571 = vset.pattern.permute.xlu0 0
        %572 = vperm.xlu0 %571, %v566
        %v573 = vpop.permute.xlu0 %572
        %576 = vset.pattern.permute.xlu0 0
        %577 = vperm.xlu0 %576, %v567
        %v578 = vpop.permute.xlu0 %577
        %581 = vset.pattern.permute.xlu0 0
        %582 = vperm.xlu0 %581, %v568
        %v583 = vpop.permute.xlu0 %582
        %586 = vset.pattern.permute.xlu0 0
        %587 = vperm.xlu0 %586, %v569
        %v588 = vpop.permute.xlu0 %587
        %v594 = vunpack.c.l.b16 %v561
        %v595 = vunpack.c.l.b16 %v562
        %v596 = vunpack.c.l.b16 %v563
        %v597 = vunpack.c.l.b16 %v564
        %v598 = vpack.c.b16 %v595, %v594
        %v599 = vpack.c.b16 %v597, %v596
        %vm600 = vcmask 130048
        %v602 = vsel %vm600, %v598, 0
        %v605 = vsel %vm600, %v599, 0
        %607 = vmatprep.subr.bf16.mxu0 0
        %608 = vmatpush1.bf16.msra.mxu0 %v565
        %609 = vmatprep.subr.bf16.mxu0 0
        %610 = vmatpush1.bf16.msra.mxu0 0
        %611 = vmatprep.subr.bf16.mxu0 0
        %612 = vmatpush1.bf16.msra.mxu0 0
        %613 = vmatprep.subr.bf16.mxu0 0
        %614 = vmatpush1.bf16.msra.mxu0 0
        %615 = vmatprep.subr.bf16.mxu0 0
        %616 = vmatpush1.bf16.msra.mxu0 0
        %617 = vmatprep.subr.bf16.mxu0 0
        %618 = vmatpush1.bf16.msra.mxu0 0
        %619 = vmatprep.subr.bf16.mxu0 0
        %620 = vmatpush1.bf16.msra.mxu0 0
        %621 = vmatprep.subr.bf16.mxu0 0
        %622 = vmatpush1.bf16.msra.mxu0 0
        %623 = vmatprep.subr.bf16.mxu0 0
        %624 = vmatpush1.bf16.msra.mxu0 0
        %625 = vmatprep.subr.bf16.mxu0 0
        %626 = vmatpush1.bf16.msra.mxu0 0
        %627 = vmatprep.subr.bf16.mxu0 0
        %628 = vmatpush1.bf16.msra.mxu0 0
        %629 = vmatprep.subr.bf16.mxu0 0
        %630 = vmatpush1.bf16.msra.mxu0 0
        %631 = vmatprep.subr.bf16.mxu0 0
        %632 = vmatpush1.bf16.msra.mxu0 0
        %633 = vmatprep.subr.bf16.mxu0 0
        %634 = vmatpush1.bf16.msra.mxu0 0
        %635 = vmatprep.subr.bf16.mxu0 0
        %636 = vmatpush1.bf16.msra.mxu0 0
        %637 = vmatprep.subr.bf16.mxu0 0
        %638 = vmatpush1.bf16.msra.mxu0 0
        %639 = vmatprep.mubr.bf16.mxu0 0
        %640 = vmatmul.mubr.bf16.gmra.mrb[0].mxu0 %v602
        %v641 = vpop.f32.mrb[0].mxu0
        %v642 = vadd.f32 %v573, %v641
        %v643 = vpop.f32.mrb[0].mxu0
        %v644 = vpop.f32.mrb[0].mxu0
        %v645 = vadd.f32 %v578, %v644
        %v646 = vpop.f32.mrb[0].mxu0
        %647 = vmatprep.mubr.bf16.mxu0 0
        %648 = vmatmul.mubr.bf16.gmra.mrb[0].mxu0 %v605
        %v649 = vpop.f32.mrb[0].mxu0
        %v650 = vadd.f32 %v583, %v649
        %v651 = vpop.f32.mrb[0].mxu0
        %v652 = vpop.f32.mrb[0].mxu0
        %v653 = vadd.f32 %v588, %v652
        %v654 = vpop.f32.mrb[0].mxu0
        %655 = vdwg.mxu0
        %v656 = vld [vmem:[%s430] sm:$0xff]
        %v657 = vld [vmem:[%s430 + $0x8] sm:$0xff]
        %v658 = vld [vmem:[%s430 + $0x10] sm:$0xff]
        %v659 = vld [vmem:[%s430 + $0x18] sm:$0xff]
        %661 = vset.pattern.permute.xlu0 0
        %662 = vperm.xlu0 %661, %v656
        %v663 = vpop.permute.xlu0 %662
        %666 = vset.pattern.permute.xlu0 0
        %667 = vperm.xlu0 %666, %v657
        %v668 = vpop.permute.xlu0 %667
        %671 = vset.pattern.permute.xlu0 0
        %672 = vperm.xlu0 %671, %v658
        %v673 = vpop.permute.xlu0 %672
        %676 = vset.pattern.permute.xlu0 0
        %677 = vperm.xlu0 %676, %v659
        %v678 = vpop.permute.xlu0 %677
        %v680 = vadd.f32 %v663, %v642
        %v681 = vadd.f32 %v668, %v645
        %v682 = vadd.f32 %v673, %v650
        %v683 = vadd.f32 %v678, %v653
        %v684 = vsub.f32 0.0, %v680
        %v685 = vsub.f32 0.0, %v681
        %v686 = vsub.f32 0.0, %v682
        %v687 = vsub.f32 0.0, %v683
        %v688 = vmul.f32 %v684, 1.442695
        %v689 = vpow.pop %v688
        %v690 = vmul.f32 %v685, 1.442695
        %v691 = vpow.pop %v690
        %v692 = vmul.f32 %v686, 1.442695
        %v693 = vpow.pop %v692
        %v694 = vmul.f32 %v687, 1.442695
        %v695 = vpow.pop %v694
        %v696 = vadd.f32 %v689, 1.0
        %v697 = vadd.f32 %v691, 1.0
        %v698 = vadd.f32 %v693, 1.0
        %v699 = vadd.f32 %v695, 1.0
        %v700 = vrcp.pop %v696
        %v701 = vrcp.pop %v697
        %v702 = vrcp.pop %v698
        %v703 = vrcp.pop %v699
        %v704 = vsub.f32 %v432, %v436
        %v705 = vsub.f32 %v433, %v437
        %v706 = vsub.f32 %v434, %v438
        %v707 = vsub.f32 %v435, %v439
        %v708 = vmul.f32 %v700, %v704
        %v709 = vmul.f32 %v701, %v705
        %v710 = vmul.f32 %v702, %v706
        %v711 = vmul.f32 %v703, %v707
        %v712 = vadd.f32 %v436, %v708
        %v713 = vadd.f32 %v437, %v709
        %v714 = vadd.f32 %v438, %v710
        %v715 = vadd.f32 %v439, %v711
        %716 = vst [vmem:[%s425] sm:$0xff] %v712
        %717 = vst [vmem:[%s425 + $0x8] sm:$0xff] %v713
        %718 = vst [vmem:[%s425 + $0x10] sm:$0xff] %v714
        %719 = vst [vmem:[%s425 + $0x18] sm:$0xff] %v715
        %s720 = sand.u32 %s234, 1
        %s721 = scalar_lea.sflag [#allocation5], %s720
        %s722 = sand.u32 %s234, 1
        %s723 = smul.addr %s722, 32
        %s724 = scalar_lea.vmem [#allocation6], %s723
        // Predicated region
        $region95: #{tpu_custom_call.1} parent=85 // pred_check
          %p725 = pneg %p244
        $region96: #{tpu_custom_call.1} parent=85 // pred_check_branch
          %727 = sbr.rel (%p725) target = $region98
        $region97: #{tpu_custom_call.1} parent=85 // pred_region
          %s729 = ssub.s32 512, 512
          %730 = vsyncadd %s721, %s729
          %s731 = smul.addr %s29, 8
          %s732 = sadd.s32 %s30, %s731
          %s733 = smul.addr %s732, 128
          %s734 = scalar_lea.hbm %s8, %s733
          %s735 = sshll.u32 %s724, 4
          %s736 = int_to_ptr.vmem [resolvable:$true] %s735
          %741 = dma.vmem_to_hbm [thread:$0]  %s736, 512, %s734, %s721, 128, 256, 8
        $region98: #{tpu_custom_call.1} parent=85 // pred_fallthru
          _
      $region86: #{tpu_custom_call.1} parent=5 // pred_fallthru
        _
      %p742 = scmp.le.s32.totalorder 2, %s20
      // Predicated region
      $region99: #{tpu_custom_call.1} parent=5 // pred_check
        %p743 = pneg %p742
      $region100: #{tpu_custom_call.1} parent=5 // pred_check_branch
        %745 = sbr.rel (%p743) target = $region102
      $region101: #{tpu_custom_call.1} parent=5 // pred_region
        %s746 = ssub.s32 %s20, 2
        // Predicated region
        $region103: #{tpu_custom_call.1} parent=101 // pred_check
          %p747 = pneg %p250
        $region104: #{tpu_custom_call.1} parent=101 // pred_check_branch
          %749 = sbr.rel (%p747) target = $region106
        $region105: #{tpu_custom_call.1} parent=101 // pred_region
          %s750 = sand.u32 %s235, 1
          %s751 = scalar_lea.sflag [#allocation5], %s750
          %s752 = sand.u32 %s235, 1
          %s753 = smul.addr %s752, 32
          %s754 = scalar_lea.vmem [#allocation6], %s753
          %755 = dma.done %s751, 512
        $region106: #{tpu_custom_call.1} parent=101 // pred_fallthru
          _
      $region102: #{tpu_custom_call.1} parent=5 // pred_fallthru
        _
    $region6: #{tpu_custom_call.1} parent=1 // loop_footer
      %s24 = sadd.s32 1, %s20
    $region7: #{tpu_custom_call.1} parent=1 // loop_footer_branch
      %19 = sbr.rel target = $region3
    $region8: #{tpu_custom_call.1} parent=1 // loop_exit
      _
    %756 = vsyncpa [#allocation4], 1
    %s757 = scalar_lea.sflag [#allocation4], 1
    %758 = vsyncpa %s757, 1
    %759 = vsyncpa [#allocation5], 1
    %s760 = scalar_lea.sflag [#allocation5], 1
    %761 = vsyncpa %s760, 1

</llo_original>
